<compile_context>
chip_gen: v7x
topology: tpu7x:2x2x1
jax: 0.10.0
libtpu: 0.0.40
codegen_flags: <defaults>
</compile_context>

<pallas_src>
import jax
import jax.numpy as jnp
from jax.experimental import pallas as pl
from jax.experimental.pallas import tpu as pltpu

_LANE = 128


def _round_up(v, m):
    return ((v + m - 1) // m) * m


def _outconv_kernel(x_ref, w_ref, b_ref, o_ref):
    # x_ref: (bn, Cin, tr, 128)  VMEM  input pixel tiles (bn images)
    # w_ref: (Cout, Cin)         SMEM  1x1 conv weights (f32)
    # b_ref: (Cout,)             SMEM  bias (f32)
    # o_ref: (bn, Cout, tr, 128) VMEM  output pixel tiles
    bn, cin = x_ref.shape[0], x_ref.shape[1]
    cout = w_ref.shape[0]
    for n in range(bn):  # bn is capped small -> static unroll is cheap
        planes = [x_ref[n, ci, :, :] for ci in range(cin)]
        for co in range(cout):
            acc = planes[0] * w_ref[co, 0]          # promotes to f32
            for ci in range(1, cin):
                acc = acc + planes[ci] * w_ref[co, ci]
            o_ref[n, co, :, :] = (acc + b_ref[co]).astype(o_ref.dtype)


def outconv_forward(x_nchw, weight, bias, *, max_rows_per_block=2048):
    """1x1 Conv2d forward (NCHW in, NCHW out).

    x_nchw : (N, Cin, H, W)
    weight : (Cout, Cin, 1, 1)   (PyTorch Conv2d layout)
    bias   : (Cout,)
    returns: (N, Cout, H, W)  in x_nchw.dtype
    """
    N, Cin, H, W = x_nchw.shape
    Cout = weight.shape[0]
    M = H * W
    itemsize = jnp.dtype(x_nchw.dtype).itemsize

    # Sublane alignment: 8 rows for 32-bit, 16 for 16-bit (bf16 packing).
    row_align = 16 if itemsize < 4 else 8

    # Rows-per-block target, capped by a ~28 MiB double-buffered VMEM budget
    # (2 x (in + out) blocks) so it fits every generation incl. v7x (64 MiB).
    pipeline_budget = 28 << 20
    budget_rows = max(
        row_align,
        (pipeline_budget // (2 * (Cin + Cout) * _LANE * itemsize))
        // row_align * row_align,
    )
    target_rows = min(_round_up(max(max_rows_per_block, row_align), row_align),
                      budget_rows)

    R = pl.cdiv(M, _LANE)        # pixel rows of 128 lanes per (image, channel)
    m_pad = R * _LANE

    if R >= target_rows:
        tr, bn = target_rows, 1
    else:
        # Small images: fold several images into one block so each grid step
        # still issues a sizable DMA.  Keep the static unroll bounded.
        tr = R
        bn = min(N,
                 max(1, target_rows // max(R, 1)),
                 max(1, 256 // (Cin + Cout)),
                 32)
        while N % bn:            # keep the batch grid exactly divisible
            bn -= 1

    grid_n = N // bn
    grid_r = pl.cdiv(R, tr)

    # v7x megacore balance: if everything landed in a single (large) block,
    # split the row axis so both TensorCores get work.
    if (grid_n * grid_r == 1 and tr >= 2 * row_align
            and bn * (Cin + Cout) * tr * _LANE * itemsize >= (2 << 20)):
        tr = _round_up((tr + 1) // 2, row_align)
        grid_r = pl.cdiv(R, tr)

    # Pixels -> (R, 128) lanes.  Pad only when H*W is not a multiple of 128;
    # the ragged last row-block (R % tr != 0) is handled by Pallas masking,
    # with no wrapper pad/slice traffic.
    x_rows = x_nchw.reshape(N, Cin, M)
    if m_pad != M:
        x_rows = jnp.pad(x_rows, ((0, 0), (0, 0), (0, m_pad - M)))
    x_blk = x_rows.reshape(N, Cin, R, _LANE)

    w_mat = weight.reshape(Cout, Cin).astype(jnp.float32)
    b_vec = bias.reshape(Cout).astype(jnp.float32)

    block_bytes = bn * (Cin + Cout) * tr * _LANE * itemsize
    vmem_limit = int(min(48 << 20, max(32 << 20, 2 * block_bytes + (4 << 20))))

    out_blk = pl.pallas_call(
        _outconv_kernel,
        out_shape=jax.ShapeDtypeStruct((N, Cout, R, _LANE), x_nchw.dtype),
        grid_spec=pltpu.PrefetchScalarGridSpec(
            num_scalar_prefetch=0,
            grid=(grid_n, grid_r),
            in_specs=[
                pl.BlockSpec((bn, Cin, tr, _LANE), lambda n, r: (n, 0, r, 0)),
                pl.BlockSpec(memory_space=pltpu.MemorySpace.SMEM),
                pl.BlockSpec(memory_space=pltpu.MemorySpace.SMEM),
            ],
            out_specs=pl.BlockSpec((bn, Cout, tr, _LANE),
                                   lambda n, r: (n, 0, r, 0)),
        ),
        compiler_params=pltpu.CompilerParams(
            dimension_semantics=("parallel", "parallel"),
            vmem_limit_bytes=vmem_limit,
        ),
        cost_estimate=pl.CostEstimate(
            flops=2 * N * M * Cin * Cout,
            transcendentals=0,
            bytes_accessed=(itemsize * N * M * (Cin + Cout)
                            + 4 * (Cout * Cin + Cout)),
        ),
    )(x_blk, w_mat, b_vec)

    out = out_blk.reshape(N, Cout, m_pad)
    if m_pad != M:
        out = out[:, :, :M]
    return out.reshape(N, Cout, H, W)


if __name__ == "__main__":
    key = jax.random.PRNGKey(0)
    k_x, k_w, k_b = jax.random.split(key, 3)

    N, Cin, Cout, Hs, Ws = 2, 4, 3, 16, 16

    x = jax.random.normal(k_x, (N, Cin, Hs, Ws), dtype=jnp.float32)
    # Conv2d param shapes: weight (Cout, Cin, 1, 1), bias (Cout,)
    weight = jax.random.normal(k_w, (Cout, Cin, 1, 1), dtype=jnp.float32) * 0.1
    bias = jax.random.normal(k_b, (Cout,), dtype=jnp.float32) * 0.1

    y = outconv_forward(x, weight, bias)
    jax.block_until_ready(y)

    # Reference check (plain JAX): 1x1 conv == per-pixel channel matmul.
    y_ref = (jnp.einsum("nchw,oc->nohw", x, weight.reshape(Cout, Cin))
             + bias[None, :, None, None])
    assert y.shape == (N, Cout, Hs, Ws)
    assert jnp.allclose(y, y_ref, atol=1e-5, rtol=1e-5)

    print("KERNEL_OK")
</pallas_src>

<mosaic_0001>
module attributes {stable_mosaic.version = 11 : i64} {
  func.func @_outconv_kernel(%arg0: i32, %arg1: i32, %arg2: memref<2x4x2x128xf32, #tpu.memory_space<vmem>>, %arg3: memref<3x4xf32, #tpu.memory_space<smem>>, %arg4: memref<3xf32, #tpu.memory_space<smem>>, %arg5: memref<2x3x2x128xf32, #tpu.memory_space<vmem>>) attributes {dimension_semantics = [#tpu.dimension_semantics<parallel>, #tpu.dimension_semantics<parallel>], iteration_bounds = array<i64: 1, 1>, scalar_prefetch = 0 : i64, scratch_operands = 0 : i64, tpu.core_type = #tpu.core_type<tc>, window_params = [{transform_indices = @transform_0, window_bounds = array<i64: 2, 4, 2, 128>}, {transform_indices = @transform_1, window_bounds = array<i64: 3, 4>}, {transform_indices = @transform_2, window_bounds = array<i64: 3>}, {transform_indices = @transform_3, window_bounds = array<i64: 2, 3, 2, 128>}]} {
    %c0 = arith.constant 0 : index
    %c0_0 = arith.constant 0 : index
    %c0_1 = arith.constant 0 : index
    %c0_2 = arith.constant 0 : index
    %0 = vector.load %arg2[%c0, %c0_0, %c0_1, %c0_2] : memref<2x4x2x128xf32, #tpu.memory_space<vmem>>, vector<1x1x2x128xf32>
    %1 = vector.shape_cast %0 : vector<1x1x2x128xf32> to vector<2x128xf32>
    %c0_3 = arith.constant 0 : index
    %c1 = arith.constant 1 : index
    %c0_4 = arith.constant 0 : index
    %c0_5 = arith.constant 0 : index
    %2 = vector.load %arg2[%c0_3, %c1, %c0_4, %c0_5] : memref<2x4x2x128xf32, #tpu.memory_space<vmem>>, vector<1x1x2x128xf32>
    %3 = vector.shape_cast %2 : vector<1x1x2x128xf32> to vector<2x128xf32>
    %c0_6 = arith.constant 0 : index
    %c2 = arith.constant 2 : index
    %c0_7 = arith.constant 0 : index
    %c0_8 = arith.constant 0 : index
    %4 = vector.load %arg2[%c0_6, %c2, %c0_7, %c0_8] : memref<2x4x2x128xf32, #tpu.memory_space<vmem>>, vector<1x1x2x128xf32>
    %5 = vector.shape_cast %4 : vector<1x1x2x128xf32> to vector<2x128xf32>
    %c0_9 = arith.constant 0 : index
    %c3 = arith.constant 3 : index
    %c0_10 = arith.constant 0 : index
    %c0_11 = arith.constant 0 : index
    %6 = vector.load %arg2[%c0_9, %c3, %c0_10, %c0_11] : memref<2x4x2x128xf32, #tpu.memory_space<vmem>>, vector<1x1x2x128xf32>
    %7 = vector.shape_cast %6 : vector<1x1x2x128xf32> to vector<2x128xf32>
    %c0_12 = arith.constant 0 : index
    %c0_13 = arith.constant 0 : index
    %8 = memref.load %arg3[%c0_12, %c0_13] : memref<3x4xf32, #tpu.memory_space<smem>>
    %9 = vector.broadcast %8 : f32 to vector<2x128xf32>
    %10 = arith.mulf %1, %9 : vector<2x128xf32>
    %c0_14 = arith.constant 0 : index
    %c1_15 = arith.constant 1 : index
    %11 = memref.load %arg3[%c0_14, %c1_15] : memref<3x4xf32, #tpu.memory_space<smem>>
    %12 = vector.broadcast %11 : f32 to vector<2x128xf32>
    %13 = arith.mulf %3, %12 : vector<2x128xf32>
    %14 = arith.addf %10, %13 : vector<2x128xf32>
    %c0_16 = arith.constant 0 : index
    %c2_17 = arith.constant 2 : index
    %15 = memref.load %arg3[%c0_16, %c2_17] : memref<3x4xf32, #tpu.memory_space<smem>>
    %16 = vector.broadcast %15 : f32 to vector<2x128xf32>
    %17 = arith.mulf %5, %16 : vector<2x128xf32>
    %18 = arith.addf %14, %17 : vector<2x128xf32>
    %c0_18 = arith.constant 0 : index
    %c3_19 = arith.constant 3 : index
    %19 = memref.load %arg3[%c0_18, %c3_19] : memref<3x4xf32, #tpu.memory_space<smem>>
    %20 = vector.broadcast %19 : f32 to vector<2x128xf32>
    %21 = arith.mulf %7, %20 : vector<2x128xf32>
    %22 = arith.addf %18, %21 : vector<2x128xf32>
    %c0_20 = arith.constant 0 : index
    %23 = memref.load %arg4[%c0_20] : memref<3xf32, #tpu.memory_space<smem>>
    %24 = vector.broadcast %23 : f32 to vector<2x128xf32>
    %25 = arith.addf %22, %24 : vector<2x128xf32>
    %c0_21 = arith.constant 0 : index
    %c0_22 = arith.constant 0 : index
    %c0_23 = arith.constant 0 : index
    %c0_24 = arith.constant 0 : index
    %26 = vector.load %arg5[%c0_21, %c0_22, %c0_23, %c0_24] : memref<2x3x2x128xf32, #tpu.memory_space<vmem>>, vector<1x1x2x128xf32>
    %27 = vector.shape_cast %26 : vector<1x1x2x128xf32> to vector<2x128xf32>
    %28 = vector.shape_cast %25 : vector<2x128xf32> to vector<1x1x2x128xf32>
    tpu.vector_store %arg5[%c0_21, %c0_22, %c0_23, %c0_24], %28 {strides = array<i32>} : memref<2x3x2x128xf32, #tpu.memory_space<vmem>>, vector<1x1x2x128xf32>,
    %c1_25 = arith.constant 1 : index
    %c0_26 = arith.constant 0 : index
    %29 = memref.load %arg3[%c1_25, %c0_26] : memref<3x4xf32, #tpu.memory_space<smem>>
    %30 = vector.broadcast %29 : f32 to vector<2x128xf32>
    %31 = arith.mulf %1, %30 : vector<2x128xf32>
    %c1_27 = arith.constant 1 : index
    %c1_28 = arith.constant 1 : index
    %32 = memref.load %arg3[%c1_27, %c1_28] : memref<3x4xf32, #tpu.memory_space<smem>>
    %33 = vector.broadcast %32 : f32 to vector<2x128xf32>
    %34 = arith.mulf %3, %33 : vector<2x128xf32>
    %35 = arith.addf %31, %34 : vector<2x128xf32>
    %c1_29 = arith.constant 1 : index
    %c2_30 = arith.constant 2 : index
    %36 = memref.load %arg3[%c1_29, %c2_30] : memref<3x4xf32, #tpu.memory_space<smem>>
    %37 = vector.broadcast %36 : f32 to vector<2x128xf32>
    %38 = arith.mulf %5, %37 : vector<2x128xf32>
    %39 = arith.addf %35, %38 : vector<2x128xf32>
    %c1_31 = arith.constant 1 : index
    %c3_32 = arith.constant 3 : index
    %40 = memref.load %arg3[%c1_31, %c3_32] : memref<3x4xf32, #tpu.memory_space<smem>>
    %41 = vector.broadcast %40 : f32 to vector<2x128xf32>
    %42 = arith.mulf %7, %41 : vector<2x128xf32>
    %43 = arith.addf %39, %42 : vector<2x128xf32>
    %c1_33 = arith.constant 1 : index
    %44 = memref.load %arg4[%c1_33] : memref<3xf32, #tpu.memory_space<smem>>
    %45 = vector.broadcast %44 : f32 to vector<2x128xf32>
    %46 = arith.addf %43, %45 : vector<2x128xf32>
    %c0_34 = arith.constant 0 : index
    %c1_35 = arith.constant 1 : index
    %c0_36 = arith.constant 0 : index
    %c0_37 = arith.constant 0 : index
    %47 = vector.load %arg5[%c0_34, %c1_35, %c0_36, %c0_37] : memref<2x3x2x128xf32, #tpu.memory_space<vmem>>, vector<1x1x2x128xf32>
    %48 = vector.shape_cast %47 : vector<1x1x2x128xf32> to vector<2x128xf32>
    %49 = vector.shape_cast %46 : vector<2x128xf32> to vector<1x1x2x128xf32>
    tpu.vector_store %arg5[%c0_34, %c1_35, %c0_36, %c0_37], %49 {strides = array<i32>} : memref<2x3x2x128xf32, #tpu.memory_space<vmem>>, vector<1x1x2x128xf32>,
    %c2_38 = arith.constant 2 : index
    %c0_39 = arith.constant 0 : index
    %50 = memref.load %arg3[%c2_38, %c0_39] : memref<3x4xf32, #tpu.memory_space<smem>>
    %51 = vector.broadcast %50 : f32 to vector<2x128xf32>
    %52 = arith.mulf %1, %51 : vector<2x128xf32>
    %c2_40 = arith.constant 2 : index
    %c1_41 = arith.constant 1 : index
    %53 = memref.load %arg3[%c2_40, %c1_41] : memref<3x4xf32, #tpu.memory_space<smem>>
    %54 = vector.broadcast %53 : f32 to vector<2x128xf32>
    %55 = arith.mulf %3, %54 : vector<2x128xf32>
    %56 = arith.addf %52, %55 : vector<2x128xf32>
    %c2_42 = arith.constant 2 : index
    %c2_43 = arith.constant 2 : index
    %57 = memref.load %arg3[%c2_42, %c2_43] : memref<3x4xf32, #tpu.memory_space<smem>>
    %58 = vector.broadcast %57 : f32 to vector<2x128xf32>
    %59 = arith.mulf %5, %58 : vector<2x128xf32>
    %60 = arith.addf %56, %59 : vector<2x128xf32>
    %c2_44 = arith.constant 2 : index
    %c3_45 = arith.constant 3 : index
    %61 = memref.load %arg3[%c2_44, %c3_45] : memref<3x4xf32, #tpu.memory_space<smem>>
    %62 = vector.broadcast %61 : f32 to vector<2x128xf32>
    %63 = arith.mulf %7, %62 : vector<2x128xf32>
    %64 = arith.addf %60, %63 : vector<2x128xf32>
    %c2_46 = arith.constant 2 : index
    %65 = memref.load %arg4[%c2_46] : memref<3xf32, #tpu.memory_space<smem>>
    %66 = vector.broadcast %65 : f32 to vector<2x128xf32>
    %67 = arith.addf %64, %66 : vector<2x128xf32>
    %c0_47 = arith.constant 0 : index
    %c2_48 = arith.constant 2 : index
    %c0_49 = arith.constant 0 : index
    %c0_50 = arith.constant 0 : index
    %68 = vector.load %arg5[%c0_47, %c2_48, %c0_49, %c0_50] : memref<2x3x2x128xf32, #tpu.memory_space<vmem>>, vector<1x1x2x128xf32>
    %69 = vector.shape_cast %68 : vector<1x1x2x128xf32> to vector<2x128xf32>
    %70 = vector.shape_cast %67 : vector<2x128xf32> to vector<1x1x2x128xf32>
    tpu.vector_store %arg5[%c0_47, %c2_48, %c0_49, %c0_50], %70 {strides = array<i32>} : memref<2x3x2x128xf32, #tpu.memory_space<vmem>>, vector<1x1x2x128xf32>,
    %c1_51 = arith.constant 1 : index
    %c0_52 = arith.constant 0 : index
    %c0_53 = arith.constant 0 : index
    %c0_54 = arith.constant 0 : index
    %71 = vector.load %arg2[%c1_51, %c0_52, %c0_53, %c0_54] : memref<2x4x2x128xf32, #tpu.memory_space<vmem>>, vector<1x1x2x128xf32>
    %72 = vector.shape_cast %71 : vector<1x1x2x128xf32> to vector<2x128xf32>
    %c1_55 = arith.constant 1 : index
    %c1_56 = arith.constant 1 : index
    %c0_57 = arith.constant 0 : index
    %c0_58 = arith.constant 0 : index
    %73 = vector.load %arg2[%c1_55, %c1_56, %c0_57, %c0_58] : memref<2x4x2x128xf32, #tpu.memory_space<vmem>>, vector<1x1x2x128xf32>
    %74 = vector.shape_cast %73 : vector<1x1x2x128xf32> to vector<2x128xf32>
    %c1_59 = arith.constant 1 : index
    %c2_60 = arith.constant 2 : index
    %c0_61 = arith.constant 0 : index
    %c0_62 = arith.constant 0 : index
    %75 = vector.load %arg2[%c1_59, %c2_60, %c0_61, %c0_62] : memref<2x4x2x128xf32, #tpu.memory_space<vmem>>, vector<1x1x2x128xf32>
    %76 = vector.shape_cast %75 : vector<1x1x2x128xf32> to vector<2x128xf32>
    %c1_63 = arith.constant 1 : index
    %c3_64 = arith.constant 3 : index
    %c0_65 = arith.constant 0 : index
    %c0_66 = arith.constant 0 : index
    %77 = vector.load %arg2[%c1_63, %c3_64, %c0_65, %c0_66] : memref<2x4x2x128xf32, #tpu.memory_space<vmem>>, vector<1x1x2x128xf32>
    %78 = vector.shape_cast %77 : vector<1x1x2x128xf32> to vector<2x128xf32>
    %c0_67 = arith.constant 0 : index
    %c0_68 = arith.constant 0 : index
    %79 = memref.load %arg3[%c0_67, %c0_68] : memref<3x4xf32, #tpu.memory_space<smem>>
    %80 = vector.broadcast %79 : f32 to vector<2x128xf32>
    %81 = arith.mulf %72, %80 : vector<2x128xf32>
    %c0_69 = arith.constant 0 : index
    %c1_70 = arith.constant 1 : index
    %82 = memref.load %arg3[%c0_69, %c1_70] : memref<3x4xf32, #tpu.memory_space<smem>>
    %83 = vector.broadcast %82 : f32 to vector<2x128xf32>
    %84 = arith.mulf %74, %83 : vector<2x128xf32>
    %85 = arith.addf %81, %84 : vector<2x128xf32>
    %c0_71 = arith.constant 0 : index
    %c2_72 = arith.constant 2 : index
    %86 = memref.load %arg3[%c0_71, %c2_72] : memref<3x4xf32, #tpu.memory_space<smem>>
    %87 = vector.broadcast %86 : f32 to vector<2x128xf32>
    %88 = arith.mulf %76, %87 : vector<2x128xf32>
    %89 = arith.addf %85, %88 : vector<2x128xf32>
    %c0_73 = arith.constant 0 : index
    %c3_74 = arith.constant 3 : index
    %90 = memref.load %arg3[%c0_73, %c3_74] : memref<3x4xf32, #tpu.memory_space<smem>>
    %91 = vector.broadcast %90 : f32 to vector<2x128xf32>
    %92 = arith.mulf %78, %91 : vector<2x128xf32>
    %93 = arith.addf %89, %92 : vector<2x128xf32>
    %c0_75 = arith.constant 0 : index
    %94 = memref.load %arg4[%c0_75] : memref<3xf32, #tpu.memory_space<smem>>
    %95 = vector.broadcast %94 : f32 to vector<2x128xf32>
    %96 = arith.addf %93, %95 : vector<2x128xf32>
    %c1_76 = arith.constant 1 : index
    %c0_77 = arith.constant 0 : index
    %c0_78 = arith.constant 0 : index
    %c0_79 = arith.constant 0 : index
    %97 = vector.load %arg5[%c1_76, %c0_77, %c0_78, %c0_79] : memref<2x3x2x128xf32, #tpu.memory_space<vmem>>, vector<1x1x2x128xf32>
    %98 = vector.shape_cast %97 : vector<1x1x2x128xf32> to vector<2x128xf32>
    %99 = vector.shape_cast %96 : vector<2x128xf32> to vector<1x1x2x128xf32>
    tpu.vector_store %arg5[%c1_76, %c0_77, %c0_78, %c0_79], %99 {strides = array<i32>} : memref<2x3x2x128xf32, #tpu.memory_space<vmem>>, vector<1x1x2x128xf32>,
    %c1_80 = arith.constant 1 : index
    %c0_81 = arith.constant 0 : index
    %100 = memref.load %arg3[%c1_80, %c0_81] : memref<3x4xf32, #tpu.memory_space<smem>>
    %101 = vector.broadcast %100 : f32 to vector<2x128xf32>
    %102 = arith.mulf %72, %101 : vector<2x128xf32>
    %c1_82 = arith.constant 1 : index
    %c1_83 = arith.constant 1 : index
    %103 = memref.load %arg3[%c1_82, %c1_83] : memref<3x4xf32, #tpu.memory_space<smem>>
    %104 = vector.broadcast %103 : f32 to vector<2x128xf32>
    %105 = arith.mulf %74, %104 : vector<2x128xf32>
    %106 = arith.addf %102, %105 : vector<2x128xf32>
    %c1_84 = arith.constant 1 : index
    %c2_85 = arith.constant 2 : index
    %107 = memref.load %arg3[%c1_84, %c2_85] : memref<3x4xf32, #tpu.memory_space<smem>>
    %108 = vector.broadcast %107 : f32 to vector<2x128xf32>
    %109 = arith.mulf %76, %108 : vector<2x128xf32>
    %110 = arith.addf %106, %109 : vector<2x128xf32>
    %c1_86 = arith.constant 1 : index
    %c3_87 = arith.constant 3 : index
    %111 = memref.load %arg3[%c1_86, %c3_87] : memref<3x4xf32, #tpu.memory_space<smem>>
    %112 = vector.broadcast %111 : f32 to vector<2x128xf32>
    %113 = arith.mulf %78, %112 : vector<2x128xf32>
    %114 = arith.addf %110, %113 : vector<2x128xf32>
    %c1_88 = arith.constant 1 : index
    %115 = memref.load %arg4[%c1_88] : memref<3xf32, #tpu.memory_space<smem>>
    %116 = vector.broadcast %115 : f32 to vector<2x128xf32>
    %117 = arith.addf %114, %116 : vector<2x128xf32>
    %c1_89 = arith.constant 1 : index
    %c1_90 = arith.constant 1 : index
    %c0_91 = arith.constant 0 : index
    %c0_92 = arith.constant 0 : index
    %118 = vector.load %arg5[%c1_89, %c1_90, %c0_91, %c0_92] : memref<2x3x2x128xf32, #tpu.memory_space<vmem>>, vector<1x1x2x128xf32>
    %119 = vector.shape_cast %118 : vector<1x1x2x128xf32> to vector<2x128xf32>
    %120 = vector.shape_cast %117 : vector<2x128xf32> to vector<1x1x2x128xf32>
    tpu.vector_store %arg5[%c1_89, %c1_90, %c0_91, %c0_92], %120 {strides = array<i32>} : memref<2x3x2x128xf32, #tpu.memory_space<vmem>>, vector<1x1x2x128xf32>,
    %c2_93 = arith.constant 2 : index
    %c0_94 = arith.constant 0 : index
    %121 = memref.load %arg3[%c2_93, %c0_94] : memref<3x4xf32, #tpu.memory_space<smem>>
    %122 = vector.broadcast %121 : f32 to vector<2x128xf32>
    %123 = arith.mulf %72, %122 : vector<2x128xf32>
    %c2_95 = arith.constant 2 : index
    %c1_96 = arith.constant 1 : index
    %124 = memref.load %arg3[%c2_95, %c1_96] : memref<3x4xf32, #tpu.memory_space<smem>>
    %125 = vector.broadcast %124 : f32 to vector<2x128xf32>
    %126 = arith.mulf %74, %125 : vector<2x128xf32>
    %127 = arith.addf %123, %126 : vector<2x128xf32>
    %c2_97 = arith.constant 2 : index
    %c2_98 = arith.constant 2 : index
    %128 = memref.load %arg3[%c2_97, %c2_98] : memref<3x4xf32, #tpu.memory_space<smem>>
    %129 = vector.broadcast %128 : f32 to vector<2x128xf32>
    %130 = arith.mulf %76, %129 : vector<2x128xf32>
    %131 = arith.addf %127, %130 : vector<2x128xf32>
    %c2_99 = arith.constant 2 : index
    %c3_100 = arith.constant 3 : index
    %132 = memref.load %arg3[%c2_99, %c3_100] : memref<3x4xf32, #tpu.memory_space<smem>>
    %133 = vector.broadcast %132 : f32 to vector<2x128xf32>
    %134 = arith.mulf %78, %133 : vector<2x128xf32>
    %135 = arith.addf %131, %134 : vector<2x128xf32>
    %c2_101 = arith.constant 2 : index
    %136 = memref.load %arg4[%c2_101] : memref<3xf32, #tpu.memory_space<smem>>
    %137 = vector.broadcast %136 : f32 to vector<2x128xf32>
    %138 = arith.addf %135, %137 : vector<2x128xf32>
    %c1_102 = arith.constant 1 : index
    %c2_103 = arith.constant 2 : index
    %c0_104 = arith.constant 0 : index
    %c0_105 = arith.constant 0 : index
    %139 = vector.load %arg5[%c1_102, %c2_103, %c0_104, %c0_105] : memref<2x3x2x128xf32, #tpu.memory_space<vmem>>, vector<1x1x2x128xf32>
    %140 = vector.shape_cast %139 : vector<1x1x2x128xf32> to vector<2x128xf32>
    %141 = vector.shape_cast %138 : vector<2x128xf32> to vector<1x1x2x128xf32>
    tpu.vector_store %arg5[%c1_102, %c2_103, %c0_104, %c0_105], %141 {strides = array<i32>} : memref<2x3x2x128xf32, #tpu.memory_space<vmem>>, vector<1x1x2x128xf32>,
    return
  }
  func.func @transform_0(%arg0: i32, %arg1: i32) -> (i32, i32, i32, i32) {
    %c0_i32 = arith.constant 0 : i32
    %c0_i32_0 = arith.constant 0 : i32
    %c0_i32_1 = arith.constant 0 : i32
    return %arg0, %c0_i32, %arg1, %c0_i32_0 : i32, i32, i32, i32
  }
  func.func @transform_1(%arg0: i32, %arg1: i32) -> (i32, i32) {
    %c0_i32 = arith.constant 0 : i32
    %c0_i32_0 = arith.constant 0 : i32
    %c0_i32_1 = arith.constant 0 : i32
    return %c0_i32, %c0_i32_0 : i32, i32
  }
  func.func @transform_2(%arg0: i32, %arg1: i32) -> i32 {
    %c0_i32 = arith.constant 0 : i32
    %c0_i32_0 = arith.constant 0 : i32
    return %c0_i32 : i32
  }
  func.func @transform_3(%arg0: i32, %arg1: i32) -> (i32, i32, i32, i32) {
    %c0_i32 = arith.constant 0 : i32
    %c0_i32_0 = arith.constant 0 : i32
    %c0_i32_1 = arith.constant 0 : i32
    return %arg0, %c0_i32, %arg1, %c0_i32_0 : i32, i32, i32, i32
  }
}

</mosaic_0001>

<llo_original>
// kernel: tpu_custom_call.1
$region0: #{tpu_custom_call.1}
  #allocation0 [shape = 'u32[]', space=smem, size = 0x4, offset = 0x4, fixed_abs, tag = 'smem constant byte address 0x4 - core index']
  #allocation1 [shape = 'u32[144,128]{1,0:T(1,128)}', space=vmem, size = 0x12000, scoped, tag = 'internal scratch']
  %s0 = inlined_call_operand.hbm [shape: f32[2,4,2,128], index: 0, kind: input, shape index: {}]
  %s1 = inlined_call_operand.hbm [shape: f32[3,4], index: 1, kind: input, shape index: {}]
  %s2 = inlined_call_operand.vmem [shape: f32[3], index: 2, kind: input, shape index: {}]
  %s3 = inlined_call_operand.hbm [shape: f32[2,3,2,128], index: 3, kind: output, shape index: {}]
  %s4 = sld [smem:[#allocation0]]
  $region34: #{tpu_custom_call.1} parent=0
    _
  %s6 = ssub.s32 1, %s4
  %s7 = scalar_select 0, %s6, %s4
  $region1: #{tpu_custom_call.1} parent=0
    #allocation2 [shape = 'u8[8192]{0}', space=vmem, size = 0x2000, scoped, tag = 'input window, operand 0, single buffered']
    #allocation3 [shape = 's32[1]{0}', space=sflag, size = 0x4, scoped, tag = 'scoped memory for tpu_custom_call.1']
    #allocation4 [shape = 's32[1]{0}', space=sflag, size = 0x4, scoped, tag = 'scoped memory for tpu_custom_call.1']
    #allocation5 [shape = 's32[1]{0}', space=sflag, size = 0x4, scoped, tag = 'scoped memory for tpu_custom_call.1']
    #allocation6 [shape = 's32[1]{0}', space=sflag, size = 0x4, scoped, tag = 'scoped memory for tpu_custom_call.1']
    #allocation7 [shape = 'u8[2048]{0}', space=smem, size = 0x800, scoped, tag = 'input window, operand 1, single buffered']
    #allocation8 [shape = 'u8[512]{0}', space=smem, size = 0x200, scoped, tag = 'input window, operand 2, single buffered']
    #allocation9 [shape = 'u8[6144]{0}', space=vmem, size = 0x1800, scoped, tag = 'output window, operand 0, single buffered']
    %8 = vsyncpa [#allocation3], 0
    %9 = vsyncpa [#allocation5], 0
    %10 = vsyncpa [#allocation6], 0
    %11 = vsyncpa [#allocation4], 0
    // Predicated region
    $region2: #{tpu_custom_call.1} parent=1 // pred_check
      _
    $region3: #{tpu_custom_call.1} parent=1 // pred_check_branch
      %13 = sbr.rel (0) target = $region5
    $region4: #{tpu_custom_call.1} parent=1 // pred_region
      %s15 = ssub.s32 256, 256
      %16 = vsyncadd [#allocation3], %s15
      %s17 = sshll.u32 [#allocation2], 4
      %s18 = int_to_ptr.vmem [resolvable:$true] %s17
      %23 = dma.hbm_to_vmem [thread:$0]  %s0, 256, %s18, [#allocation3], 32, 32, 2
    $region5: #{tpu_custom_call.1} parent=1 // pred_fallthru
      _
    // Predicated region
    $region6: #{tpu_custom_call.1} parent=1 // pred_check
      _
    $region7: #{tpu_custom_call.1} parent=1 // pred_check_branch
      %25 = sbr.rel (0) target = $region9
    $region8: #{tpu_custom_call.1} parent=1 // pred_region
      %s27 = ssub.s32 64, 64
      %28 = vsyncadd [#allocation5], %s27
      %31 = dma.hbm_to_smem %s1, 64, [#allocation7], [#allocation5]
    $region9: #{tpu_custom_call.1} parent=1 // pred_fallthru
      _
    // Predicated region
    $region10: #{tpu_custom_call.1} parent=1 // pred_check
      _
    $region11: #{tpu_custom_call.1} parent=1 // pred_check_branch
      %33 = sbr.rel (0) target = $region13
    $region12: #{tpu_custom_call.1} parent=1 // pred_region
      %s35 = ssub.s32 16, 16
      %36 = vsyncadd [#allocation6], %s35
      %s38 = sshll.u32 %s2, 4
      %s39 = int_to_ptr.vmem [resolvable:$true] %s38
      %41 = dma.vmem_to_smem %s39, 16, [#allocation8], [#allocation6]
    $region13: #{tpu_custom_call.1} parent=1 // pred_fallthru
      _
    // Predicated region
    $region14: #{tpu_custom_call.1} parent=1 // pred_check
      _
    $region15: #{tpu_custom_call.1} parent=1 // pred_check_branch
      %43 = sbr.rel (0) target = $region17
    $region16: #{tpu_custom_call.1} parent=1 // pred_region
      %44 = dma.done [#allocation3], 256
    $region17: #{tpu_custom_call.1} parent=1 // pred_fallthru
      _
    // Predicated region
    $region18: #{tpu_custom_call.1} parent=1 // pred_check
      _
    $region19: #{tpu_custom_call.1} parent=1 // pred_check_branch
      %46 = sbr.rel (0) target = $region21
    $region20: #{tpu_custom_call.1} parent=1 // pred_region
      %47 = dma.done [#allocation5], 64
    $region21: #{tpu_custom_call.1} parent=1 // pred_fallthru
      _
    // Predicated region
    $region22: #{tpu_custom_call.1} parent=1 // pred_check
      _
    $region23: #{tpu_custom_call.1} parent=1 // pred_check_branch
      %49 = sbr.rel (0) target = $region25
    $region24: #{tpu_custom_call.1} parent=1 // pred_region
      %50 = dma.done [#allocation6], 16
    $region25: #{tpu_custom_call.1} parent=1 // pred_fallthru
      _
    %51 = sfence
    %v52 = vld [vmem:[#allocation2] sm:$0x3]
    %s53 = scalar_lea.vmem [#allocation2], 2
    %v54 = vld [vmem:[%s53] sm:$0x3]
    %s55 = scalar_lea.vmem [#allocation2], 4
    %v56 = vld [vmem:[%s55] sm:$0x3]
    %s57 = scalar_lea.vmem [#allocation2], 6
    %v58 = vld [vmem:[%s57] sm:$0x3]
    %s59 = sld [smem:[#allocation7]]
    %v60 = vstv %s59
    %v61 = vmul.f32 %v52, %v60
    %s62 = sld [smem:[#allocation7 + $0x1]]
    %v63 = vstv %s62
    %v64 = vmul.f32 %v54, %v63
    %v65 = vadd.f32 %v61, %v64
    %s66 = sld [smem:[#allocation7 + $0x2]]
    %v67 = vstv %s66
    %v68 = vmul.f32 %v56, %v67
    %v69 = vadd.f32 %v65, %v68
    %s70 = sld [smem:[#allocation7 + $0x3]]
    %v71 = vstv %s70
    %v72 = vmul.f32 %v58, %v71
    %v73 = vadd.f32 %v69, %v72
    %s74 = sld [smem:[#allocation8]]
    %v75 = vstv %s74
    %v76 = vadd.f32 %v73, %v75
    %77 = vst [vmem:[#allocation9] sm:$0x3] %v76
    %s78 = sld [smem:[#allocation7 + $0x80]]
    %v79 = vstv %s78
    %v80 = vmul.f32 %v52, %v79
    %s81 = sld [smem:[#allocation7 + $0x81]]
    %v82 = vstv %s81
    %v83 = vmul.f32 %v54, %v82
    %v84 = vadd.f32 %v80, %v83
    %s85 = sld [smem:[#allocation7 + $0x82]]
    %v86 = vstv %s85
    %v87 = vmul.f32 %v56, %v86
    %v88 = vadd.f32 %v84, %v87
    %s89 = sld [smem:[#allocation7 + $0x83]]
    %v90 = vstv %s89
    %v91 = vmul.f32 %v58, %v90
    %v92 = vadd.f32 %v88, %v91
    %s93 = sld [smem:[#allocation8 + $0x1]]
    %v94 = vstv %s93
    %v95 = vadd.f32 %v92, %v94
    %s96 = scalar_lea.vmem [#allocation9], 2
    %97 = vst [vmem:[%s96] sm:$0x3] %v95
    %s98 = sld [smem:[#allocation7 + $0x100]]
    %v99 = vstv %s98
    %v100 = vmul.f32 %v52, %v99
    %s101 = sld [smem:[#allocation7 + $0x101]]
    %v102 = vstv %s101
    %v103 = vmul.f32 %v54, %v102
    %v104 = vadd.f32 %v100, %v103
    %s105 = sld [smem:[#allocation7 + $0x102]]
    %v106 = vstv %s105
    %v107 = vmul.f32 %v56, %v106
    %v108 = vadd.f32 %v104, %v107
    %s109 = sld [smem:[#allocation7 + $0x103]]
    %v110 = vstv %s109
    %v111 = vmul.f32 %v58, %v110
    %v112 = vadd.f32 %v108, %v111
    %s113 = sld [smem:[#allocation8 + $0x2]]
    %v114 = vstv %s113
    %v115 = vadd.f32 %v112, %v114
    %s116 = scalar_lea.vmem [#allocation9], 4
    %117 = vst [vmem:[%s116] sm:$0x3] %v115
    %s118 = scalar_lea.vmem [#allocation2], 8
    %v119 = vld [vmem:[%s118] sm:$0x3]
    %s120 = scalar_lea.vmem [#allocation2], 10
    %v121 = vld [vmem:[%s120] sm:$0x3]
    %s122 = scalar_lea.vmem [#allocation2], 12
    %v123 = vld [vmem:[%s122] sm:$0x3]
    %s124 = scalar_lea.vmem [#allocation2], 14
    %v125 = vld [vmem:[%s124] sm:$0x3]
    %s126 = sld [smem:[#allocation7]]
    %v127 = vstv %s126
    %v128 = vmul.f32 %v119, %v127
    %s129 = sld [smem:[#allocation7 + $0x1]]
    %v130 = vstv %s129
    %v131 = vmul.f32 %v121, %v130
    %v132 = vadd.f32 %v128, %v131
    %s133 = sld [smem:[#allocation7 + $0x2]]
    %v134 = vstv %s133
    %v135 = vmul.f32 %v123, %v134
    %v136 = vadd.f32 %v132, %v135
    %s137 = sld [smem:[#allocation7 + $0x3]]
    %v138 = vstv %s137
    %v139 = vmul.f32 %v125, %v138
    %v140 = vadd.f32 %v136, %v139
    %s141 = sld [smem:[#allocation8]]
    %v142 = vstv %s141
    %v143 = vadd.f32 %v140, %v142
    %s144 = scalar_lea.vmem [#allocation9], 6
    %145 = vst [vmem:[%s144] sm:$0x3] %v143
    %s146 = sld [smem:[#allocation7 + $0x80]]
    %v147 = vstv %s146
    %v148 = vmul.f32 %v119, %v147
    %s149 = sld [smem:[#allocation7 + $0x81]]
    %v150 = vstv %s149
    %v151 = vmul.f32 %v121, %v150
    %v152 = vadd.f32 %v148, %v151
    %s153 = sld [smem:[#allocation7 + $0x82]]
    %v154 = vstv %s153
    %v155 = vmul.f32 %v123, %v154
    %v156 = vadd.f32 %v152, %v155
    %s157 = sld [smem:[#allocation7 + $0x83]]
    %v158 = vstv %s157
    %v159 = vmul.f32 %v125, %v158
    %v160 = vadd.f32 %v156, %v159
    %s161 = sld [smem:[#allocation8 + $0x1]]
    %v162 = vstv %s161
    %v163 = vadd.f32 %v160, %v162
    %s164 = scalar_lea.vmem [#allocation9], 8
    %165 = vst [vmem:[%s164] sm:$0x3] %v163
    %s166 = sld [smem:[#allocation7 + $0x100]]
    %v167 = vstv %s166
    %v168 = vmul.f32 %v119, %v167
    %s169 = sld [smem:[#allocation7 + $0x101]]
    %v170 = vstv %s169
    %v171 = vmul.f32 %v121, %v170
    %v172 = vadd.f32 %v168, %v171
    %s173 = sld [smem:[#allocation7 + $0x102]]
    %v174 = vstv %s173
    %v175 = vmul.f32 %v123, %v174
    %v176 = vadd.f32 %v172, %v175
    %s177 = sld [smem:[#allocation7 + $0x103]]
    %v178 = vstv %s177
    %v179 = vmul.f32 %v125, %v178
    %v180 = vadd.f32 %v176, %v179
    %s181 = sld [smem:[#allocation8 + $0x2]]
    %v182 = vstv %s181
    %v183 = vadd.f32 %v180, %v182
    %s184 = scalar_lea.vmem [#allocation9], 10
    %185 = vst [vmem:[%s184] sm:$0x3] %v183
    // Predicated region
    $region26: #{tpu_custom_call.1} parent=1 // pred_check
      _
    $region27: #{tpu_custom_call.1} parent=1 // pred_check_branch
      %187 = sbr.rel (0) target = $region29
    $region28: #{tpu_custom_call.1} parent=1 // pred_region
      %s189 = ssub.s32 192, 192
      %190 = vsyncadd [#allocation4], %s189
      %s191 = sshll.u32 [#allocation9], 4
      %s192 = int_to_ptr.vmem [resolvable:$true] %s191
      %197 = dma.vmem_to_hbm [thread:$0]  %s192, 192, %s3, [#allocation4], 32, 32, 2
    $region29: #{tpu_custom_call.1} parent=1 // pred_fallthru
      _
    // Predicated region
    $region30: #{tpu_custom_call.1} parent=1 // pred_check
      _
    $region31: #{tpu_custom_call.1} parent=1 // pred_check_branch
      %199 = sbr.rel (0) target = $region33
    $region32: #{tpu_custom_call.1} parent=1 // pred_region
      %200 = dma.done [#allocation4], 192
    $region33: #{tpu_custom_call.1} parent=1 // pred_fallthru
      _
    %201 = vsyncpa [#allocation3], 1
    %202 = vsyncpa [#allocation4], 1
    %203 = vsyncpa [#allocation5], 1
    %204 = vsyncpa [#allocation6], 1

</llo_original>
